<compile_context>
chip_gen: v7x
topology: tpu7x:2x2x1
jax: 0.10.0
libtpu: 0.0.40
codegen_flags: <defaults>
</compile_context>

<pallas_src>
import jax
import jax.numpy as jnp
from jax.experimental import pallas as pl
from jax.experimental.pallas import tpu as pltpu


# Below this batch size a plain-XLA expression beats the Pallas launch overhead.
_SMALL_BATCH_XLA_CUTOFF = 2048


def fused_mlp_kernel(wt_ref, b_ref, xt_ref, ot_ref):
    # wt_ref: (8, 10) fused weight (VMEM-resident, constant block index)
    # b_ref : (8, 1)  fused bias   (VMEM-resident)
    # xt_ref: (10, tb) activations, batch on the lane axis
    # ot_ref: (8, tb)  lane-dense output block (unmasked vst)
    y = jnp.dot(wt_ref[...], xt_ref[...], preferred_element_type=jnp.float32)
    y = y + b_ref[...]                       # (8,1) broadcasts across batch lanes
    # sigmoid = 1 / (1 + exp(-y)): exp -> EUP, exact reciprocal (keeps the
    # 1e-5 tolerance; approx=True would cost ~2e-4 relative error).
    ot_ref[...] = pl.reciprocal(1.0 + jnp.exp(-y), approx=False).astype(ot_ref.dtype)


def _choose_tile(batch, tile_b):
    """Pick a lane-multiple tile that yields >=2 grid steps for large batches."""
    if batch <= 256:
        return batch                                   # single full-extent block (exempt from (8,128) rule)
    # >= 2 grid steps so v7x can shard across both TensorCores; tile must be a
    # multiple of 128 lanes (partial last block is masked by Pallas).
    return min(tile_b, pl.cdiv(pl.cdiv(batch, 2), 128) * 128)


def nn_model_forward(x, w_t_fused, b_fused_col, *, tile_b=32768, force_pallas=False):
    """x: (B, 10); w_t_fused: (8, 10) pre-fused weight; b_fused_col: (8, 1) pre-fused bias."""
    B, in_dim = x.shape
    out_dim = w_t_fused.shape[0]

    # Small-batch bailout: a single-step Pallas launch costs ~1 us of fixed
    # overhead that dwarfs the actual work at small B.
    if B <= _SMALL_BATCH_XLA_CUTOFF and not force_pallas:
        return jax.nn.sigmoid(x @ w_t_fused.T + b_fused_col[:, 0])

    # Batch on the lane axis: x_T is (in_dim, B).
    x_t = x.T

    tb = _choose_tile(B, tile_b)
    grid = (pl.cdiv(B, tb),)

    cost = pl.CostEstimate(
        flops=2 * B * in_dim * out_dim,
        transcendentals=out_dim * B,
        bytes_accessed=B * (in_dim + out_dim) * 4 + (in_dim * out_dim + out_dim) * 4,
    )

    out_t = pl.pallas_call(
        fused_mlp_kernel,
        out_shape=jax.ShapeDtypeStruct((out_dim, B), x.dtype),
        grid=grid,
        in_specs=[
            pl.BlockSpec((out_dim, in_dim), lambda i: (0, 0)),  # VMEM-resident weight
            pl.BlockSpec((out_dim, 1), lambda i: (0, 0)),       # VMEM-resident bias
            pl.BlockSpec((in_dim, tb), lambda i: (0, i)),       # streamed over batch (lanes)
        ],
        out_specs=pl.BlockSpec((out_dim, tb), lambda i: (0, i)),  # lane-dense output
        compiler_params=pltpu.CompilerParams(
            dimension_semantics=("parallel",),       # dual-TC sharding on v7x
            vmem_limit_bytes=32 * 1024 * 1024,       # safe on v5e/v6e/v7x; working set ~6 MiB
        ),
        cost_estimate=cost,
    )(w_t_fused, b_fused_col, x_t)

    return out_t.T  # back to (B, 8)


def init_params(key):
    """Deterministic init mimicking PyTorch nn.Linear default (uniform +/- 1/sqrt(fan_in))."""
    k1, k2, k3, k4 = jax.random.split(key, 4)
    bound1 = 1.0 / jnp.sqrt(10.0)
    w1 = jax.random.uniform(k1, (4, 10), jnp.float32, -bound1, bound1)
    b1 = jax.random.uniform(k2, (4,), jnp.float32, -bound1, bound1)
    bound2 = 1.0 / jnp.sqrt(4.0)
    w2 = jax.random.uniform(k3, (8, 4), jnp.float32, -bound2, bound2)
    b2 = jax.random.uniform(k4, (8,), jnp.float32, -bound2, bound2)
    return w1, b1, w2, b2


def fuse_params(w1, b1, w2, b2):
    """Fold Linear(10,4) and Linear(4,8) into one affine map (exact: no activation between).

    Returned in the transposed (output-major) orientation used by the kernel:
      y.T = sigmoid(W_t @ x.T + b_col)  with  W_t = W2 @ W1 (8,10), b_col (8,1).
    """
    w_t_fused = w2 @ w1                          # (8, 4) @ (4, 10) -> (8, 10)
    b_fused_col = (w2 @ b1 + b2).reshape(-1, 1)  # (8, 1)
    return w_t_fused, b_fused_col


if __name__ == "__main__":
    key = jax.random.PRNGKey(0)
    kx, kp = jax.random.split(key)

    B = 8
    x = jax.random.normal(kx, (B, 10), jnp.float32)
    w1, b1, w2, b2 = init_params(kp)
    w_t_fused, b_fused_col = fuse_params(w1, b1, w2, b2)

    # Force the Pallas path so the kernel itself is exercised at this small demo size.
    out = nn_model_forward(x, w_t_fused, b_fused_col, force_pallas=True)
    out = jax.block_until_ready(out)

    # Reference: plain JAX with the UNfused math (same as the PyTorch module).
    ref = jax.nn.sigmoid((x @ w1.T + b1) @ w2.T + b2)
    assert out.shape == (B, 8)
    assert jnp.allclose(out, ref, atol=1e-5, rtol=1e-5), "Pallas path mismatch vs reference"

    # Default (small-batch XLA bailout) path must match too.
    out_xla = jax.block_until_ready(nn_model_forward(x, w_t_fused, b_fused_col))
    assert jnp.allclose(out_xla, ref, atol=1e-5, rtol=1e-5), "XLA bailout path mismatch vs reference"

    print("KERNEL_OK")
</pallas_src>

<mosaic_0001>
module attributes {stable_mosaic.version = 11 : i64} {
  func.func @fused_mlp_kernel(%arg0: i32, %arg1: memref<8x10xf32, #tpu.memory_space<vmem>>, %arg2: memref<8x1xf32, #tpu.memory_space<vmem>>, %arg3: memref<10x8xf32, #tpu.memory_space<vmem>>, %arg4: memref<8x8xf32, #tpu.memory_space<vmem>>) attributes {dimension_semantics = [#tpu.dimension_semantics<parallel>], iteration_bounds = array<i64: 1>, scalar_prefetch = 0 : i64, scratch_operands = 0 : i64, tpu.core_type = #tpu.core_type<tc>, window_params = [{pipeline_mode = #tpu.pipeline_mode<synchronous>, transform_indices = @transform_0, window_bounds = array<i64: 8, 10>}, {pipeline_mode = #tpu.pipeline_mode<synchronous>, transform_indices = @transform_1, window_bounds = array<i64: 8, 1>}, {transform_indices = @transform_2, window_bounds = array<i64: 10, 8>}, {transform_indices = @transform_3, window_bounds = array<i64: 8, 8>}]} {
    %c0 = arith.constant 0 : index
    %c0_0 = arith.constant 0 : index
    %0 = vector.load %arg1[%c0, %c0_0] : memref<8x10xf32, #tpu.memory_space<vmem>>, vector<8x10xf32>
    %c0_1 = arith.constant 0 : index
    %c0_2 = arith.constant 0 : index
    %1 = vector.load %arg3[%c0_1, %c0_2] : memref<10x8xf32, #tpu.memory_space<vmem>>, vector<10x8xf32>
    %cst = arith.constant dense<0.000000e+00> : vector<8x8xf32>
    %2 = tpu.matmul %0, %1, %cst {dimension_numbers = #tpu.dot_dimension_numbers<[1], [0], [0], [1], [0, 0, 1, 1], [], []>} : vector<8x10xf32>, vector<10x8xf32>, vector<8x8xf32> -> vector<8x8xf32>
    %c0_3 = arith.constant 0 : index
    %c0_4 = arith.constant 0 : index
    %3 = vector.load %arg2[%c0_3, %c0_4] : memref<8x1xf32, #tpu.memory_space<vmem>>, vector<8x1xf32>
    %4 = vector.broadcast %3 : vector<8x1xf32> to vector<8x8xf32>
    %5 = arith.addf %2, %4 : vector<8x8xf32>
    %cst_5 = arith.constant 0.000000e+00 : f32
    %6 = vector.broadcast %cst_5 : f32 to vector<8x8xf32>
    %7 = arith.subf %6, %5 : vector<8x8xf32>
    %8 = math.exp %7 : vector<8x8xf32>
    %cst_6 = arith.constant 1.000000e+00 : f32
    %9 = vector.broadcast %cst_6 : f32 to vector<8x8xf32>
    %10 = arith.addf %9, %8 : vector<8x8xf32>
    %11 = tpu.reciprocal %10 : vector<8x8xf32> -> vector<8x8xf32>
    %c0_7 = arith.constant 0 : index
    %c0_8 = arith.constant 0 : index
    %12 = vector.load %arg4[%c0_7, %c0_8] : memref<8x8xf32, #tpu.memory_space<vmem>>, vector<8x8xf32>
    tpu.vector_store %arg4[%c0_7, %c0_8], %11 {strides = array<i32>} : memref<8x8xf32, #tpu.memory_space<vmem>>, vector<8x8xf32>,
    return
  }
  func.func @transform_0(%arg0: i32) -> (i32, i32) {
    %c0_i32 = arith.constant 0 : i32
    %c0_i32_0 = arith.constant 0 : i32
    %c0_i32_1 = arith.constant 0 : i32
    return %c0_i32, %c0_i32_0 : i32, i32
  }
  func.func @transform_1(%arg0: i32) -> (i32, i32) {
    %c0_i32 = arith.constant 0 : i32
    %c0_i32_0 = arith.constant 0 : i32
    %c0_i32_1 = arith.constant 0 : i32
    return %c0_i32, %c0_i32_0 : i32, i32
  }
  func.func @transform_2(%arg0: i32) -> (i32, i32) {
    %c0_i32 = arith.constant 0 : i32
    %c0_i32_0 = arith.constant 0 : i32
    return %c0_i32, %arg0 : i32, i32
  }
  func.func @transform_3(%arg0: i32) -> (i32, i32) {
    %c0_i32 = arith.constant 0 : i32
    %c0_i32_0 = arith.constant 0 : i32
    return %c0_i32, %arg0 : i32, i32
  }
}

</mosaic_0001>

<llo_original>
// kernel: tpu_custom_call.1
$region0: #{tpu_custom_call.1}
  #allocation0 [shape = 'u32[]', space=smem, size = 0x4, offset = 0x4, fixed_abs, tag = 'smem constant byte address 0x4 - core index']
  #allocation1 [shape = 'u32[144,128]{1,0:T(1,128)}', space=vmem, size = 0x12000, scoped, tag = 'internal scratch']
  %s0 = inlined_call_operand.vmem [shape: f32[8,10], index: 0, kind: input, shape index: {}]
  %s1 = inlined_call_operand.vmem [shape: f32[8,1], index: 1, kind: input, shape index: {}]
  %s2 = inlined_call_operand.vmem [shape: f32[10,8], index: 2, kind: input, shape index: {}]
  %s3 = inlined_call_operand.hbm [shape: f32[8,8], index: 3, kind: output, shape index: {}]
  %s4 = sld [smem:[#allocation0]]
  $region22: #{tpu_custom_call.1} parent=0
    _
  %s6 = ssub.s32 1, %s4
  %s7 = scalar_select 0, %s6, %s4
  $region1: #{tpu_custom_call.1} parent=0
    #allocation2 [shape = 'u8[4096]{0}', space=vmem, size = 0x1000, scoped, tag = 'output window, operand 0, single buffered']
    #allocation3 [shape = 's32[1]{0}', space=sflag, size = 0x4, scoped, tag = 'scoped memory for tpu_custom_call.1']
    %8 = vsyncpa [#allocation3], 0
    // Predicated region
    $region2: #{tpu_custom_call.1} parent=1 // pred_check
      _
    $region3: #{tpu_custom_call.1} parent=1 // pred_check_branch
      %10 = sbr.rel (0) target = $region5
    $region4: #{tpu_custom_call.1} parent=1 // pred_region
      _
    $region5: #{tpu_custom_call.1} parent=1 // pred_fallthru
      _
    // Predicated region
    $region6: #{tpu_custom_call.1} parent=1 // pred_check
      _
    $region7: #{tpu_custom_call.1} parent=1 // pred_check_branch
      %12 = sbr.rel (0) target = $region9
    $region8: #{tpu_custom_call.1} parent=1 // pred_region
      _
    $region9: #{tpu_custom_call.1} parent=1 // pred_fallthru
      _
    // Predicated region
    $region10: #{tpu_custom_call.1} parent=1 // pred_check
      _
    $region11: #{tpu_custom_call.1} parent=1 // pred_check_branch
      %14 = sbr.rel (0) target = $region13
    $region12: #{tpu_custom_call.1} parent=1 // pred_region
      _
    $region13: #{tpu_custom_call.1} parent=1 // pred_fallthru
      _
    %v15 = vld [vmem:[%s0] sm:$0xff]
    %v16 = vld [vmem:[%s2] sm:$0xff]
    %v17 = vld [vmem:[%s2 + $0x8] sm:$0x3]
    %v18 = vld [vmem:[%s1] sm:$0xff]
    %20 = vset.pattern.permute.xlu0 0
    %21 = vperm.xlu0 %20, %v18
    %v22 = vpop.permute.xlu0 %21
    %vm24 = vcmask 80896
    %v26 = vsel %vm24, %v15, 0
    %vm28 = vcmask 1041408
    %v30 = vsel %vm28, %v17, 0
    %32 = vmatprep.subr.mxu0 0.0
    %33 = vmatpush1.msra.mxu0 %v16
    %34 = vmatprep.subr.mxu0 0.0
    %35 = vmatpush1.msra.mxu0 %v30
    %36 = vmatprep.subr.mxu0 0.0
    %37 = vmatpush1.msra.mxu0 0.0
    %38 = vmatprep.subr.mxu0 0.0
    %39 = vmatpush1.msra.mxu0 0.0
    %40 = vmatprep.subr.mxu0 0.0
    %41 = vmatpush1.msra.mxu0 0.0
    %42 = vmatprep.subr.mxu0 0.0
    %43 = vmatpush1.msra.mxu0 0.0
    %44 = vmatprep.subr.mxu0 0.0
    %45 = vmatpush1.msra.mxu0 0.0
    %46 = vmatprep.subr.mxu0 0.0
    %47 = vmatpush1.msra.mxu0 0.0
    %48 = vmatprep.subr.mxu0 0.0
    %49 = vmatpush1.msra.mxu0 0.0
    %50 = vmatprep.subr.mxu0 0.0
    %51 = vmatpush1.msra.mxu0 0.0
    %52 = vmatprep.subr.mxu0 0.0
    %53 = vmatpush1.msra.mxu0 0.0
    %54 = vmatprep.subr.mxu0 0.0
    %55 = vmatpush1.msra.mxu0 0.0
    %56 = vmatprep.subr.mxu0 0.0
    %57 = vmatpush1.msra.mxu0 0.0
    %58 = vmatprep.subr.mxu0 0.0
    %59 = vmatpush1.msra.mxu0 0.0
    %60 = vmatprep.subr.mxu0 0.0
    %61 = vmatpush1.msra.mxu0 0.0
    %62 = vmatprep.subr.mxu0 0.0
    %63 = vmatpush1.msra.mxu0 0.0
    %64 = vmatprep.subr.mxu0 0.0
    %65 = vmatpush1.msra.mxu0 0.0
    %66 = vmatprep.subr.mxu0 0.0
    %67 = vmatpush1.msra.mxu0 0.0
    %68 = vmatprep.subr.mxu0 0.0
    %69 = vmatpush1.msra.mxu0 0.0
    %70 = vmatprep.subr.mxu0 0.0
    %71 = vmatpush1.msra.mxu0 0.0
    %72 = vmatprep.subr.mxu0 0.0
    %73 = vmatpush1.msra.mxu0 0.0
    %74 = vmatprep.subr.mxu0 0.0
    %75 = vmatpush1.msra.mxu0 0.0
    %76 = vmatprep.subr.mxu0 0.0
    %77 = vmatpush1.msra.mxu0 0.0
    %78 = vmatprep.subr.mxu0 0.0
    %79 = vmatpush1.msra.mxu0 0.0
    %80 = vmatprep.subr.mxu0 0.0
    %81 = vmatpush1.msra.mxu0 0.0
    %82 = vmatprep.subr.mxu0 0.0
    %83 = vmatpush1.msra.mxu0 0.0
    %84 = vmatprep.subr.mxu0 0.0
    %85 = vmatpush1.msra.mxu0 0.0
    %86 = vmatprep.subr.mxu0 0.0
    %87 = vmatpush1.msra.mxu0 0.0
    %88 = vmatprep.subr.mxu0 0.0
    %89 = vmatpush1.msra.mxu0 0.0
    %90 = vmatprep.subr.mxu0 0.0
    %91 = vmatpush1.msra.mxu0 0.0
    %92 = vmatprep.subr.mxu0 0.0
    %93 = vmatpush1.msra.mxu0 0.0
    %94 = vmatprep.subr.mxu0 0.0
    %95 = vmatpush1.msra.mxu0 0.0
    %96 = vmatprep.mubr.f32.mxu0 0.0
    %97 = vmatmul.mubr.f32.gmra.mrb[0].mxu0 %v26
    %v98 = vpop.f32.mrb[0].mxu0
    %v99 = vadd.f32 %v22, %v98
    %v100 = vpop.f32.mrb[0].mxu0
    %101 = vdwg.mxu0
    %v102 = vsub.f32 0.0, %v99
    %v103 = vmul.f32 %v102, 1.442695
    %v104 = vpow.pop %v103
    %v105 = vadd.f32 %v104, 1.0
    %v106 = vrcp.pop %v105
    %vm107 = vcmask 64512
    %108 = vst.msk [vmem:[#allocation2] sm:$0xff] %vm107, %v106
    // Predicated region
    $region14: #{tpu_custom_call.1} parent=1 // pred_check
      _
    $region15: #{tpu_custom_call.1} parent=1 // pred_check_branch
      %110 = sbr.rel (0) target = $region17
    $region16: #{tpu_custom_call.1} parent=1 // pred_region
      %s112 = ssub.s32 128, 128
      %113 = vsyncadd [#allocation3], %s112
      %s115 = sshll.u32 [#allocation2], 4
      %s116 = int_to_ptr.vmem [resolvable:$true] %s115
      %118 = dma.vmem_to_hbm [thread:$0]  %s116, 128, %s3, [#allocation3]
    $region17: #{tpu_custom_call.1} parent=1 // pred_fallthru
      _
    // Predicated region
    $region18: #{tpu_custom_call.1} parent=1 // pred_check
      _
    $region19: #{tpu_custom_call.1} parent=1 // pred_check_branch
      %120 = sbr.rel (0) target = $region21
    $region20: #{tpu_custom_call.1} parent=1 // pred_region
      %121 = dma.done [#allocation3], 128
    $region21: #{tpu_custom_call.1} parent=1 // pred_fallthru
      _
    %122 = vsyncpa [#allocation3], 1

</llo_original>
